<compile_context>
chip_gen: v6e
topology: v6e:2x2x1
jax: 0.10.0
libtpu: 0.0.40
codegen_flags: <defaults>
</compile_context>

<pallas_src>
import functools

import jax
import jax.numpy as jnp
from jax.experimental import pallas as pl
from jax.experimental.pallas import tpu as pltpu

_LANE = 128
_SUBLANE = 8
_VMEM_BUDGET_PER_BUFSET = 4 << 20   # ~4 MiB per in-flight buffer set (x2 for double-buffering)
_MAX_TB = 2048                      # hard cap on rows per grid step


def _round_up(x, m):
    return (x + m - 1) // m * m


def _hebbian_kernel(x_ref, y_ref, wx_ref, wy_ref, bias_ref, out_ref):
    # slab = x @ Wx + y @ Wy + bias   (single lane-dense [tb, n_pad] tile)
    # MXU accumulates in f32; bias add stays f32; single cast at the store.
    acc = jnp.dot(x_ref[...], wx_ref[...], preferred_element_type=jnp.float32)
    acc = acc + jnp.dot(y_ref[...], wy_ref[...],
                        preferred_element_type=jnp.float32)
    out_ref[...] = (acc + bias_ref[...]).astype(out_ref.dtype)


def prepare_params(w_c, b_c, w_a, b_a, input_dim, compute_dtype=jnp.float32):
    """One-time weight preparation (hoisted out of the per-step forward).

    w_c: [1, input_dim], b_c: [1]
    w_a: [hidden_dim, input_dim + output_dim], b_a: [hidden_dim]

    Builds fused, padded, right-multiply-layout weights so the kernel writes a
    single lane-dense output slab carrying both adaptation and complexity.
    `compute_dtype=jnp.bfloat16` halves weight/activation/output HBM traffic on
    v6e/v7x (accumulation stays f32; results deviate slightly from f32).
    """
    hidden_dim = int(w_a.shape[0])
    total_in = int(w_a.shape[1])
    output_dim = total_in - input_dim

    # NOTE(perf): when hidden_dim is an exact multiple of 128 the +1 complexity
    # column grows n_pad by a full 128 lanes (e.g. 128 -> 256), doubling the
    # output-slab writeback; for those shapes a separate narrow complexity
    # output may be preferable. For all other hidden_dim the column is free.
    n_pad = max(_LANE, _round_up(hidden_dim + 1, _LANE))

    w_a_t = w_a.T.astype(jnp.float32)                       # [in+out, hidden]

    wx = jnp.zeros((input_dim, n_pad), jnp.float32)
    wx = wx.at[:, :hidden_dim].set(w_a_t[:input_dim])
    wx = wx.at[:, hidden_dim].set(w_c.reshape(-1).astype(jnp.float32))

    wy = jnp.zeros((output_dim, n_pad), jnp.float32)        # zero col keeps complexity exact
    wy = wy.at[:, :hidden_dim].set(w_a_t[input_dim:])

    bias = jnp.zeros((1, n_pad), jnp.float32)                # bias stays f32 (tiny)
    bias = bias.at[0, :hidden_dim].set(b_a.astype(jnp.float32))
    bias = bias.at[0, hidden_dim].set(b_c.reshape(()).astype(jnp.float32))

    return {
        "wx": wx.astype(compute_dtype),
        "wy": wy.astype(compute_dtype),
        "bias": bias,
        "hidden_dim": hidden_dim,
    }


def _choose_batch_tiling(B, bytes_per_row):
    """Pick (b_pad, tb) with tb a multiple of 8 that divides b_pad.

    - Pads the batch only to the 8-row sublane granule when possible.
    - Runs the whole batch in one grid step while it fits the VMEM budget
      (per-step overhead ~0.35 us dominates small tiles otherwise).
    - For large batches, picks the largest tile under the budget/cap that
      divides the 8-padded batch, naturally yielding grid >= 2 so the
      "parallel" batch axis spans both v7x TensorCores.
    """
    b8 = _round_up(B, _SUBLANE)
    max_tb = _VMEM_BUDGET_PER_BUFSET // max(bytes_per_row, 1)
    max_tb = max(_SUBLANE, min(_MAX_TB, max_tb // _SUBLANE * _SUBLANE))
    if b8 <= max_tb:
        return b8, b8                     # single grid step, pad only to 8 rows
    lo = max(_SUBLANE, max_tb // 4)
    for tb in range(max_tb, lo - 1, -_SUBLANE):
        if b8 % tb == 0:
            return b8, tb                 # no extra padding, >= 2 grid steps
    # No decent divisor: pad the batch to a multiple of max_tb (still far
    # cheaper than hundreds of tiny grid steps).
    return _round_up(b8, max_tb), max_tb


@jax.jit
def _hebbian_forward_slab(inputs, outputs, wx, wy, bias):
    B, input_dim = inputs.shape
    _, output_dim = outputs.shape
    n_pad = wx.shape[1]
    cdtype = wx.dtype

    inputs = inputs.astype(cdtype)
    outputs = outputs.astype(cdtype)

    itemsize = jnp.dtype(cdtype).itemsize
    bytes_per_row = itemsize * (input_dim + output_dim + n_pad)
    b_pad, tb = _choose_batch_tiling(B, bytes_per_row)
    if b_pad != B:
        # Only the 8-row sublane granule in the common case — negligible traffic.
        inputs = jnp.pad(inputs, ((0, b_pad - B), (0, 0)))
        outputs = jnp.pad(outputs, ((0, b_pad - B), (0, 0)))

    flops = 2 * b_pad * (input_dim + output_dim) * n_pad
    bytes_accessed = (bytes_per_row * b_pad                      # activations + slab
                      + itemsize * (input_dim + output_dim) * n_pad   # weights
                      + 4 * n_pad)                               # bias

    # NOTE(perf): the constant-index weight/bias blocks could be marked
    # pipeline_mode=pl.Buffered(1) to drop their second pipeline buffer; the
    # saving is a few KiB of VMEM, so it is omitted to keep lowering simple.
    out = pl.pallas_call(
        _hebbian_kernel,
        out_shape=jax.ShapeDtypeStruct((b_pad, n_pad), cdtype),
        grid=(b_pad // tb,),
        in_specs=[
            pl.BlockSpec((tb, input_dim), lambda i: (i, 0)),      # x: streamed
            pl.BlockSpec((tb, output_dim), lambda i: (i, 0)),     # y: streamed
            pl.BlockSpec((input_dim, n_pad), lambda i: (0, 0)),   # weights: VMEM-resident
            pl.BlockSpec((output_dim, n_pad), lambda i: (0, 0)),
            pl.BlockSpec((1, n_pad), lambda i: (0, 0)),           # bias (f32)
        ],
        out_specs=pl.BlockSpec((tb, n_pad), lambda i: (i, 0)),
        compiler_params=pltpu.CompilerParams(
            dimension_semantics=("parallel",),    # batch tiles shard across v7x's 2 TCs
            vmem_limit_bytes=32 * 1024 * 1024,
        ),
        cost_estimate=pl.CostEstimate(
            flops=flops, bytes_accessed=bytes_accessed, transcendentals=0),
    )(inputs, outputs, wx, wy, bias)
    return out


def hebbian_forward_slab(inputs, outputs, params):
    """Preferred entry point: returns the padded slab [B_pad, n_pad] where
    columns [0, hidden) hold the adaptation and column `hidden` the complexity.
    Slice lazily at the point of use to avoid extra HBM copy passes."""
    return _hebbian_forward_slab(inputs, outputs, params["wx"], params["wy"],
                                 params["bias"])


def hebbian_forward(inputs, outputs, params):
    """PyTorch-API-compatible wrapper: returns (complexity [B,1], adaptation [B,hidden]).
    The two slices materialize outside the jit; use hebbian_forward_slab when the
    consumer can read the slab directly."""
    B = inputs.shape[0]
    h = params["hidden_dim"]
    slab = hebbian_forward_slab(inputs, outputs, params)
    return slab[:B, h:h + 1], slab[:B, :h]


if __name__ == "__main__":
    # Small shapes consistent with the module.
    B = 8
    input_dim = 16
    output_dim = 8
    hidden_dim = 32

    key = jax.random.PRNGKey(0)
    k_in, k_out, k_wc, k_bc, k_wa, k_ba = jax.random.split(key, 6)

    inputs = jax.random.normal(k_in, (B, input_dim), dtype=jnp.float32)
    outputs = jax.random.normal(k_out, (B, output_dim), dtype=jnp.float32)

    # Deterministic parameter init (PyTorch Linear-style uniform bounds).
    bound_c = 1.0 / (input_dim ** 0.5)
    w_c = jax.random.uniform(k_wc, (1, input_dim), minval=-bound_c, maxval=bound_c)
    b_c = jax.random.uniform(k_bc, (1,), minval=-bound_c, maxval=bound_c)

    bound_a = 1.0 / ((input_dim + output_dim) ** 0.5)
    w_a = jax.random.uniform(k_wa, (hidden_dim, input_dim + output_dim),
                             minval=-bound_a, maxval=bound_a)
    b_a = jax.random.uniform(k_ba, (hidden_dim,), minval=-bound_a, maxval=bound_a)

    # Reference (plain JAX, same math as the PyTorch module).
    comp_ref = inputs @ w_c.T + b_c
    adapt_ref = jnp.concatenate([inputs, outputs], axis=1) @ w_a.T + b_a

    # --- f32 path (bit-faithful to the PyTorch forward semantics) ------------
    params_f32 = prepare_params(w_c, b_c, w_a, b_a, input_dim,
                                compute_dtype=jnp.float32)
    comp, adapt = hebbian_forward(inputs, outputs, params_f32)
    jax.block_until_ready((comp, adapt))

    assert comp.shape == (B, 1) and adapt.shape == (B, hidden_dim)
    assert jnp.allclose(comp, comp_ref, atol=1e-5)
    assert jnp.allclose(adapt, adapt_ref, atol=1e-5)

    # --- bf16 storage/DMA path (perf option for v6e/v7x; looser tolerance) ---
    params_bf16 = prepare_params(w_c, b_c, w_a, b_a, input_dim,
                                 compute_dtype=jnp.bfloat16)
    comp_b, adapt_b = hebbian_forward(inputs, outputs, params_bf16)
    jax.block_until_ready((comp_b, adapt_b))

    assert comp_b.shape == (B, 1) and adapt_b.shape == (B, hidden_dim)
    assert jnp.allclose(comp_b.astype(jnp.float32), comp_ref, atol=1e-1)
    assert jnp.allclose(adapt_b.astype(jnp.float32), adapt_ref, atol=1e-1)

    print("KERNEL_OK")
</pallas_src>

<mosaic_0001>
module attributes {stable_mosaic.version = 11 : i64} {
  func.func @_hebbian_kernel(%arg0: i32, %arg1: memref<8x16xf32, #tpu.memory_space<vmem>>, %arg2: memref<8x8xf32, #tpu.memory_space<vmem>>, %arg3: memref<16x128xf32, #tpu.memory_space<vmem>>, %arg4: memref<8x128xf32, #tpu.memory_space<vmem>>, %arg5: memref<1x128xf32, #tpu.memory_space<vmem>>, %arg6: memref<8x128xf32, #tpu.memory_space<vmem>>) attributes {dimension_semantics = [#tpu.dimension_semantics<parallel>], iteration_bounds = array<i64: 1>, scalar_prefetch = 0 : i64, scratch_operands = 0 : i64, tpu.core_type = #tpu.core_type<tc>, window_params = [{transform_indices = @transform_0, window_bounds = array<i64: 8, 16>}, {transform_indices = @transform_1, window_bounds = array<i64: 8, 8>}, {pipeline_mode = #tpu.pipeline_mode<synchronous>, transform_indices = @transform_2, window_bounds = array<i64: 16, 128>}, {pipeline_mode = #tpu.pipeline_mode<synchronous>, transform_indices = @transform_3, window_bounds = array<i64: 8, 128>}, {pipeline_mode = #tpu.pipeline_mode<synchronous>, transform_indices = @transform_4, window_bounds = array<i64: 1, 128>}, {transform_indices = @transform_5, window_bounds = array<i64: 8, 128>}]} {
    %c0 = arith.constant 0 : index
    %c0_0 = arith.constant 0 : index
    %0 = vector.load %arg1[%c0, %c0_0] : memref<8x16xf32, #tpu.memory_space<vmem>>, vector<8x16xf32>
    %c0_1 = arith.constant 0 : index
    %c0_2 = arith.constant 0 : index
    %1 = vector.load %arg3[%c0_1, %c0_2] : memref<16x128xf32, #tpu.memory_space<vmem>>, vector<16x128xf32>
    %cst = arith.constant dense<0.000000e+00> : vector<8x128xf32>
    %2 = tpu.matmul %0, %1, %cst {dimension_numbers = #tpu.dot_dimension_numbers<[1], [0], [0], [1], [0, 0, 1, 1], [], []>} : vector<8x16xf32>, vector<16x128xf32>, vector<8x128xf32> -> vector<8x128xf32>
    %c0_3 = arith.constant 0 : index
    %c0_4 = arith.constant 0 : index
    %3 = vector.load %arg2[%c0_3, %c0_4] : memref<8x8xf32, #tpu.memory_space<vmem>>, vector<8x8xf32>
    %c0_5 = arith.constant 0 : index
    %c0_6 = arith.constant 0 : index
    %4 = vector.load %arg4[%c0_5, %c0_6] : memref<8x128xf32, #tpu.memory_space<vmem>>, vector<8x128xf32>
    %cst_7 = arith.constant dense<0.000000e+00> : vector<8x128xf32>
    %5 = tpu.matmul %3, %4, %cst_7 {dimension_numbers = #tpu.dot_dimension_numbers<[1], [0], [0], [1], [0, 0, 1, 1], [], []>} : vector<8x8xf32>, vector<8x128xf32>, vector<8x128xf32> -> vector<8x128xf32>
    %6 = arith.addf %2, %5 : vector<8x128xf32>
    %c0_8 = arith.constant 0 : index
    %c0_9 = arith.constant 0 : index
    %7 = vector.load %arg5[%c0_8, %c0_9] : memref<1x128xf32, #tpu.memory_space<vmem>>, vector<1x128xf32>
    %8 = vector.broadcast %7 : vector<1x128xf32> to vector<8x128xf32>
    %9 = arith.addf %6, %8 : vector<8x128xf32>
    %c0_10 = arith.constant 0 : index
    %c0_11 = arith.constant 0 : index
    %10 = vector.load %arg6[%c0_10, %c0_11] : memref<8x128xf32, #tpu.memory_space<vmem>>, vector<8x128xf32>
    tpu.vector_store %arg6[%c0_10, %c0_11], %9 {strides = array<i32>} : memref<8x128xf32, #tpu.memory_space<vmem>>, vector<8x128xf32>,
    return
  }
  func.func @transform_0(%arg0: i32) -> (i32, i32) {
    %c0_i32 = arith.constant 0 : i32
    %c0_i32_0 = arith.constant 0 : i32
    return %arg0, %c0_i32 : i32, i32
  }
  func.func @transform_1(%arg0: i32) -> (i32, i32) {
    %c0_i32 = arith.constant 0 : i32
    %c0_i32_0 = arith.constant 0 : i32
    return %arg0, %c0_i32 : i32, i32
  }
  func.func @transform_2(%arg0: i32) -> (i32, i32) {
    %c0_i32 = arith.constant 0 : i32
    %c0_i32_0 = arith.constant 0 : i32
    %c0_i32_1 = arith.constant 0 : i32
    return %c0_i32, %c0_i32_0 : i32, i32
  }
  func.func @transform_3(%arg0: i32) -> (i32, i32) {
    %c0_i32 = arith.constant 0 : i32
    %c0_i32_0 = arith.constant 0 : i32
    %c0_i32_1 = arith.constant 0 : i32
    return %c0_i32, %c0_i32_0 : i32, i32
  }
  func.func @transform_4(%arg0: i32) -> (i32, i32) {
    %c0_i32 = arith.constant 0 : i32
    %c0_i32_0 = arith.constant 0 : i32
    %c0_i32_1 = arith.constant 0 : i32
    return %c0_i32, %c0_i32_0 : i32, i32
  }
  func.func @transform_5(%arg0: i32) -> (i32, i32) {
    %c0_i32 = arith.constant 0 : i32
    %c0_i32_0 = arith.constant 0 : i32
    return %arg0, %c0_i32 : i32, i32
  }
}

</mosaic_0001>

<llo_original>
// kernel: _hebbian_forward_slab.1
$region0: #{_hebbian_forward_slab.1}
  #allocation0 [shape = 'u32[]', space=smem, size = 0x4, offset = 0x4, fixed_abs, tag = 'smem constant byte address 0x4 - core index']
  #allocation1 [shape = 'u32[144,128]{1,0:T(1,128)}', space=vmem, size = 0x12000, scoped, tag = 'internal scratch']
  %s0 = inlined_call_operand.hbm [shape: f32[8,16], index: 0, kind: input, shape index: {}]
  %s1 = inlined_call_operand.hbm [shape: f32[8,8], index: 1, kind: input, shape index: {}]
  %s2 = inlined_call_operand.hbm [shape: f32[16,128], index: 2, kind: input, shape index: {}]
  %s3 = inlined_call_operand.hbm [shape: f32[8,128], index: 3, kind: input, shape index: {}]
  %s4 = inlined_call_operand.vmem [shape: f32[1,128], index: 4, kind: input, shape index: {}]
  %s5 = inlined_call_operand.hbm [shape: f32[8,128], index: 5, kind: output, shape index: {}]
  %s6 = sld [smem:[#allocation0]]
  $region46: #{_hebbian_forward_slab.1} parent=0
    _
  %s8 = ssub.s32 1, %s6
  %s9 = scalar_select 0, %s8, %s6
  $region1: #{_hebbian_forward_slab.1} parent=0
    #allocation2 [shape = 'u8[4096]{0}', space=vmem, size = 0x1000, scoped, tag = 'input window, operand 0, single buffered']
    #allocation3 [shape = 's32[1]{0}', space=sflag, size = 0x4, scoped, tag = 'scoped memory for _hebbian_forward_slab.1']
    #allocation4 [shape = 's32[1]{0}', space=sflag, size = 0x4, scoped, tag = 'scoped memory for _hebbian_forward_slab.1']
    #allocation5 [shape = 'u8[4096]{0}', space=vmem, size = 0x1000, scoped, tag = 'input window, operand 1, single buffered']
    #allocation6 [shape = 's32[1]{0}', space=sflag, size = 0x4, scoped, tag = 'scoped memory for _hebbian_forward_slab.1']
    #allocation7 [shape = 'u8[8192]{0}', space=vmem, size = 0x2000, scoped, tag = 'input window, operand 2, single buffered']
    #allocation8 [shape = 'u8[4096]{0}', space=vmem, size = 0x1000, scoped, tag = 'input window, operand 3, single buffered']
    #allocation9 [shape = 's32[1]{0}', space=sflag, size = 0x4, scoped, tag = 'scoped memory for _hebbian_forward_slab.1']
    #allocation10 [shape = 'u8[4096]{0}', space=vmem, size = 0x1000, scoped, tag = 'output window, operand 0, single buffered']
    %10 = vsyncpa [#allocation3], 0
    %11 = vsyncpa [#allocation6], 0
    %12 = vsyncpa [#allocation9], 0
    %13 = vsyncpa [#allocation4], 0
    // Predicated region
    $region2: #{_hebbian_forward_slab.1} parent=1 // pred_check
      _
    $region3: #{_hebbian_forward_slab.1} parent=1 // pred_check_branch
      %15 = sbr.rel (0) target = $region5
    $region4: #{_hebbian_forward_slab.1} parent=1 // pred_region
      %s17 = ssub.s32 128, 128
      %18 = vsyncadd [#allocation3], %s17
      %s20 = sshll.u32 [#allocation2], 4
      %s21 = int_to_ptr.vmem [resolvable:$true] %s20
      %23 = dma.hbm_to_vmem [thread:$0]  %s0, 128, %s21, [#allocation3]
    $region5: #{_hebbian_forward_slab.1} parent=1 // pred_fallthru
      _
    // Predicated region
    $region6: #{_hebbian_forward_slab.1} parent=1 // pred_check
      _
    $region7: #{_hebbian_forward_slab.1} parent=1 // pred_check_branch
      %25 = sbr.rel (0) target = $region9
    $region8: #{_hebbian_forward_slab.1} parent=1 // pred_region
      %s27 = ssub.s32 128, 128
      %28 = vsyncadd [#allocation6], %s27
      %s30 = sshll.u32 [#allocation5], 4
      %s31 = int_to_ptr.vmem [resolvable:$true] %s30
      %33 = dma.hbm_to_vmem [thread:$0]  %s1, 128, %s31, [#allocation6]
    $region9: #{_hebbian_forward_slab.1} parent=1 // pred_fallthru
      _
    // Predicated region
    $region10: #{_hebbian_forward_slab.1} parent=1 // pred_check
      _
    $region11: #{_hebbian_forward_slab.1} parent=1 // pred_check_branch
      %35 = sbr.rel (0) target = $region13
    $region12: #{_hebbian_forward_slab.1} parent=1 // pred_region
      %s37 = ssub.s32 256, 256
      %38 = vsyncadd [#allocation6], %s37
      %s39 = sshll.u32 [#allocation7], 4
      %s40 = int_to_ptr.vmem [resolvable:$true] %s39
      %45 = dma.hbm_to_vmem [thread:$0]  %s2, 256, %s40, [#allocation6], 128, 128, 8
    $region13: #{_hebbian_forward_slab.1} parent=1 // pred_fallthru
      _
    // Predicated region
    $region14: #{_hebbian_forward_slab.1} parent=1 // pred_check
      _
    $region15: #{_hebbian_forward_slab.1} parent=1 // pred_check_branch
      %47 = sbr.rel (0) target = $region17
    $region16: #{_hebbian_forward_slab.1} parent=1 // pred_region
      %s49 = ssub.s32 128, 128
      %50 = vsyncadd [#allocation9], %s49
      %s52 = sshll.u32 [#allocation8], 4
      %s53 = int_to_ptr.vmem [resolvable:$true] %s52
      %55 = dma.hbm_to_vmem [thread:$0]  %s3, 128, %s53, [#allocation9]
    $region17: #{_hebbian_forward_slab.1} parent=1 // pred_fallthru
      _
    // Predicated region
    $region18: #{_hebbian_forward_slab.1} parent=1 // pred_check
      _
    $region19: #{_hebbian_forward_slab.1} parent=1 // pred_check_branch
      %57 = sbr.rel (0) target = $region21
    $region20: #{_hebbian_forward_slab.1} parent=1 // pred_region
      _
    $region21: #{_hebbian_forward_slab.1} parent=1 // pred_fallthru
      _
    // Predicated region
    $region22: #{_hebbian_forward_slab.1} parent=1 // pred_check
      _
    $region23: #{_hebbian_forward_slab.1} parent=1 // pred_check_branch
      %59 = sbr.rel (0) target = $region25
    $region24: #{_hebbian_forward_slab.1} parent=1 // pred_region
      %60 = dma.done [#allocation3], 128
    $region25: #{_hebbian_forward_slab.1} parent=1 // pred_fallthru
      _
    // Predicated region
    $region26: #{_hebbian_forward_slab.1} parent=1 // pred_check
      _
    $region27: #{_hebbian_forward_slab.1} parent=1 // pred_check_branch
      %62 = sbr.rel (0) target = $region29
    $region28: #{_hebbian_forward_slab.1} parent=1 // pred_region
      %63 = dma.done [#allocation6], 128
    $region29: #{_hebbian_forward_slab.1} parent=1 // pred_fallthru
      _
    // Predicated region
    $region30: #{_hebbian_forward_slab.1} parent=1 // pred_check
      _
    $region31: #{_hebbian_forward_slab.1} parent=1 // pred_check_branch
      %65 = sbr.rel (0) target = $region33
    $region32: #{_hebbian_forward_slab.1} parent=1 // pred_region
      %66 = dma.done [#allocation6], 256
    $region33: #{_hebbian_forward_slab.1} parent=1 // pred_fallthru
      _
    // Predicated region
    $region34: #{_hebbian_forward_slab.1} parent=1 // pred_check
      _
    $region35: #{_hebbian_forward_slab.1} parent=1 // pred_check_branch
      %68 = sbr.rel (0) target = $region37
    $region36: #{_hebbian_forward_slab.1} parent=1 // pred_region
      %69 = dma.done [#allocation9], 128
    $region37: #{_hebbian_forward_slab.1} parent=1 // pred_fallthru
      _
    %v70 = vld [vmem:[#allocation2] sm:$0xff]
    %v71 = vld [vmem:[#allocation7] sm:$0xff]
    %v72 = vld [vmem:[#allocation7 + $0x8] sm:$0xff]
    %v73 = vld [vmem:[#allocation5] sm:$0xff]
    %v74 = vld [vmem:[#allocation8] sm:$0xff]
    %vm75 = vcmask 64512
    %v77 = vsel %vm75, %v73, 0
    %79 = vmatprep.subr.mxu0 0.0
    %80 = vmatpush1.msra.mxu0 0.0
    %81 = vmatprep.subr.mxu0 0.0
    %82 = vmatpush1.msra.mxu0 0.0
    %83 = vmatprep.subr.mxu0 0.0
    %84 = vmatpush1.msra.mxu0 0.0
    %85 = vmatprep.subr.mxu0 0.0
    %86 = vmatpush1.msra.mxu0 0.0
    %87 = vmatprep.subr.mxu0 0.0
    %88 = vmatpush1.msra.mxu0 0.0
    %89 = vmatprep.subr.mxu0 0.0
    %90 = vmatpush1.msra.mxu0 0.0
    %91 = vmatprep.subr.mxu0 0.0
    %92 = vmatpush1.msra.mxu0 0.0
    %93 = vmatprep.subr.mxu0 0.0
    %94 = vmatpush1.msra.mxu0 0.0
    %95 = vmatprep.subr.mxu0 0.0
    %96 = vmatpush1.msra.mxu0 0.0
    %97 = vmatprep.subr.mxu0 0.0
    %98 = vmatpush1.msra.mxu0 0.0
    %99 = vmatprep.subr.mxu0 0.0
    %100 = vmatpush1.msra.mxu0 0.0
    %101 = vmatprep.subr.mxu0 0.0
    %102 = vmatpush1.msra.mxu0 0.0
    %103 = vmatprep.subr.mxu0 0.0
    %104 = vmatpush1.msra.mxu0 0.0
    %105 = vmatprep.subr.mxu0 0.0
    %106 = vmatpush1.msra.mxu0 0.0
    %107 = vmatprep.subr.mxu0 0.0
    %108 = vmatpush1.msra.mxu0 0.0
    %109 = vmatprep.subr.mxu0 0.0
    %110 = vmatpush1.msra.mxu0 %v74
    %111 = vmatprep.subr.mxu0 0.0
    %112 = vmatpush2.msra.mxu0 0.0
    %113 = vmatprep.subr.mxu0 0.0
    %114 = vmatpush2.msra.mxu0 0.0
    %115 = vmatprep.subr.mxu0 0.0
    %116 = vmatpush2.msra.mxu0 0.0
    %117 = vmatprep.subr.mxu0 0.0
    %118 = vmatpush2.msra.mxu0 0.0
    %119 = vmatprep.subr.mxu0 0.0
    %120 = vmatpush2.msra.mxu0 0.0
    %121 = vmatprep.subr.mxu0 0.0
    %122 = vmatpush2.msra.mxu0 0.0
    %123 = vmatprep.subr.mxu0 0.0
    %124 = vmatpush2.msra.mxu0 0.0
    %125 = vmatprep.subr.mxu0 0.0
    %126 = vmatpush2.msra.mxu0 0.0
    %127 = vmatprep.subr.mxu0 0.0
    %128 = vmatpush2.msra.mxu0 0.0
    %129 = vmatprep.subr.mxu0 0.0
    %130 = vmatpush2.msra.mxu0 0.0
    %131 = vmatprep.subr.mxu0 0.0
    %132 = vmatpush2.msra.mxu0 0.0
    %133 = vmatprep.subr.mxu0 0.0
    %134 = vmatpush2.msra.mxu0 0.0
    %135 = vmatprep.subr.mxu0 0.0
    %136 = vmatpush2.msra.mxu0 0.0
    %137 = vmatprep.subr.mxu0 0.0
    %138 = vmatpush2.msra.mxu0 0.0
    %139 = vmatprep.subr.mxu0 0.0
    %140 = vmatpush2.msra.mxu0 0.0
    %141 = vmatprep.subr.mxu0 0.0
    %142 = vmatpush2.msra.mxu0 0.0
    %143 = vmatprep.mubr.f32.mxu0 0.0
    %144 = vmatmul.mubr.f32.gmra.mxu0 %v77
    %v145 = vpop.f32.mrf.mxu0
    %v146 = vadd.f32 0.0, %v145
    %v147 = vpop.f32.mrf.mxu0
    %148 = vdwg.mxu0
    %vm149 = vcmask 130048
    %v151 = vsel %vm149, %v70, 0
    %153 = vmatprep.subr.mxu0 0.0
    %154 = vmatpush1.msra.mxu0 0.0
    %155 = vmatprep.subr.mxu0 0.0
    %156 = vmatpush1.msra.mxu0 0.0
    %157 = vmatprep.subr.mxu0 0.0
    %158 = vmatpush1.msra.mxu0 0.0
    %159 = vmatprep.subr.mxu0 0.0
    %160 = vmatpush1.msra.mxu0 0.0
    %161 = vmatprep.subr.mxu0 0.0
    %162 = vmatpush1.msra.mxu0 0.0
    %163 = vmatprep.subr.mxu0 0.0
    %164 = vmatpush1.msra.mxu0 0.0
    %165 = vmatprep.subr.mxu0 0.0
    %166 = vmatpush1.msra.mxu0 0.0
    %167 = vmatprep.subr.mxu0 0.0
    %168 = vmatpush1.msra.mxu0 0.0
    %169 = vmatprep.subr.mxu0 0.0
    %170 = vmatpush1.msra.mxu0 0.0
    %171 = vmatprep.subr.mxu0 0.0
    %172 = vmatpush1.msra.mxu0 0.0
    %173 = vmatprep.subr.mxu0 0.0
    %174 = vmatpush1.msra.mxu0 0.0
    %175 = vmatprep.subr.mxu0 0.0
    %176 = vmatpush1.msra.mxu0 0.0
    %177 = vmatprep.subr.mxu0 0.0
    %178 = vmatpush1.msra.mxu0 0.0
    %179 = vmatprep.subr.mxu0 0.0
    %180 = vmatpush1.msra.mxu0 0.0
    %181 = vmatprep.subr.mxu0 0.0
    %182 = vmatpush1.msra.mxu0 %v72
    %183 = vmatprep.subr.mxu0 0.0
    %184 = vmatpush1.msra.mxu0 %v71
    %185 = vmatprep.subr.mxu0 0.0
    %186 = vmatpush2.msra.mxu0 0.0
    %187 = vmatprep.subr.mxu0 0.0
    %188 = vmatpush2.msra.mxu0 0.0
    %189 = vmatprep.subr.mxu0 0.0
    %190 = vmatpush2.msra.mxu0 0.0
    %191 = vmatprep.subr.mxu0 0.0
    %192 = vmatpush2.msra.mxu0 0.0
    %193 = vmatprep.subr.mxu0 0.0
    %194 = vmatpush2.msra.mxu0 0.0
    %195 = vmatprep.subr.mxu0 0.0
    %196 = vmatpush2.msra.mxu0 0.0
    %197 = vmatprep.subr.mxu0 0.0
    %198 = vmatpush2.msra.mxu0 0.0
    %199 = vmatprep.subr.mxu0 0.0
    %200 = vmatpush2.msra.mxu0 0.0
    %201 = vmatprep.subr.mxu0 0.0
    %202 = vmatpush2.msra.mxu0 0.0
    %203 = vmatprep.subr.mxu0 0.0
    %204 = vmatpush2.msra.mxu0 0.0
    %205 = vmatprep.subr.mxu0 0.0
    %206 = vmatpush2.msra.mxu0 0.0
    %207 = vmatprep.subr.mxu0 0.0
    %208 = vmatpush2.msra.mxu0 0.0
    %209 = vmatprep.subr.mxu0 0.0
    %210 = vmatpush2.msra.mxu0 0.0
    %211 = vmatprep.subr.mxu0 0.0
    %212 = vmatpush2.msra.mxu0 0.0
    %213 = vmatprep.subr.mxu0 0.0
    %214 = vmatpush2.msra.mxu0 0.0
    %215 = vmatprep.subr.mxu0 0.0
    %216 = vmatpush2.msra.mxu0 0.0
    %217 = vmatprep.mubr.f32.mxu0 0.0
    %218 = vmatmul.mubr.f32.gmra.mxu0 %v151
    %v219 = vpop.f32.mrf.mxu0
    %v220 = vadd.f32 %v146, %v219
    %v221 = vpop.f32.mrf.mxu0
    %222 = vdwg.mxu0
    %v223 = vld [vmem:[%s4] sm:$0x1]
    %v225 = vlaneseq
    %v226 = vshrl.u32 %v225, 7
    %v227 = vsub.s32 0, %v226
    %v228 = vrot.slane %v223, %v227
    %v230 = vadd.f32 %v220, %v228
    %231 = vst [vmem:[#allocation10] sm:$0xff] %v230
    // Predicated region
    $region38: #{_hebbian_forward_slab.1} parent=1 // pred_check
      _
    $region39: #{_hebbian_forward_slab.1} parent=1 // pred_check_branch
      %233 = sbr.rel (0) target = $region41
    $region40: #{_hebbian_forward_slab.1} parent=1 // pred_region
      %s235 = ssub.s32 128, 128
      %236 = vsyncadd [#allocation4], %s235
      %s238 = sshll.u32 [#allocation10], 4
      %s239 = int_to_ptr.vmem [resolvable:$true] %s238
      %241 = dma.vmem_to_hbm [thread:$0]  %s239, 128, %s5, [#allocation4]
    $region41: #{_hebbian_forward_slab.1} parent=1 // pred_fallthru
      _
    // Predicated region
    $region42: #{_hebbian_forward_slab.1} parent=1 // pred_check
      _
    $region43: #{_hebbian_forward_slab.1} parent=1 // pred_check_branch
      %243 = sbr.rel (0) target = $region45
    $region44: #{_hebbian_forward_slab.1} parent=1 // pred_region
      %244 = dma.done [#allocation4], 128
    $region45: #{_hebbian_forward_slab.1} parent=1 // pred_fallthru
      _
    %245 = vsyncpa [#allocation3], 1
    %246 = vsyncpa [#allocation6], 1
    %247 = vsyncpa [#allocation9], 1
    %248 = vsyncpa [#allocation4], 1

</llo_original>
